<compile_context>
chip_gen: v6e
topology: v6e:2x2x1
jax: 0.10.0
libtpu: 0.0.40
codegen_flags: <defaults>
</compile_context>

<pallas_src>
import functools

import jax
import jax.numpy as jnp
import numpy as np
from jax.experimental import pallas as pl
from jax.experimental.pallas import tpu as pltpu


def _conv3x3_lane_dense(pad_ref, w_ref, bias_row, nb, h, wc, k_stack):
    """3x3 'same' conv in the lane-dense layout as MXU matmul(s).

    pad_ref:  (nb, pad_rows >= h+2, wc) bf16 VMEM scratch holding
              [zero row, h data rows, zero row] per image.
    w_ref:    (3*wc, wc) bf16 banded weights if k_stack else (3, wc, wc) bf16.
    bias_row: (1, wc) f32 bias, folded into the accumulator init.
    Returns (nb, h, wc) float32.
    """
    acc = jnp.broadcast_to(bias_row, (nb * h, wc)).astype(jnp.float32)
    if k_stack:
        # One K = 3*wc matmul per conv: fills the 256-deep v6e/v7x MXU,
        # cuts MXU pushes 3 -> 1 and drops two accumulator adds.
        slab = jnp.concatenate(
            [pad_ref[:, dy:dy + h, :].reshape(nb * h, wc) for dy in range(3)],
            axis=-1)                                    # (nb*h, 3*wc) bf16
        acc = acc + jnp.dot(slab, w_ref[...],
                            preferred_element_type=jnp.float32)
    else:
        # v5-class chips (128-deep MXU): three K=wc matmuls, one accumulator.
        for dy in range(3):
            slab = pad_ref[:, dy:dy + h, :].reshape(nb * h, wc)
            acc = acc + jnp.dot(slab, w_ref[dy],
                                preferred_element_type=jnp.float32)
    return acc.reshape(nb, h, wc)


def fam_kernel(x1_ref, x2_ref, wm_ref, bm_ref, wf_ref, bf_ref, coef_ref,
               out_ref, pad_ref, *, k_stack):
    nb, h, wc = out_ref.shape

    # Re-zero only the two pad-border rows each step; the interior rows are
    # always fully overwritten below, so the kernel carries no cross-step
    # scratch state and the batch grid axis can safely be "parallel".
    zrow = jnp.zeros((nb, 1, wc), pad_ref.dtype)
    pad_ref[:, 0:1, :] = zrow
    pad_ref[:, h + 1:h + 2, :] = zrow

    x1 = x1_ref[...]                     # (nb, h, wc) f32, lane-dense
    x2 = x2_ref[...]

    # merge branch: x = relu(conv3x3(x1 * x2) + b_merge)
    pad_ref[:, 1:1 + h, :] = (x1 * x2).astype(pad_ref.dtype)
    xm = _conv3x3_lane_dense(pad_ref, wm_ref, bm_ref[...], nb, h, wc, k_stack)
    xm = jnp.maximum(xm, 0.0)

    # y = coef[0] * x1 + coef[1] * x2    (coef pre-tiled to W*C lanes)
    y = coef_ref[0:1, :] * x1 + coef_ref[1:2, :] * x2

    # fusion branch: out = conv3x3(x + y) + b_fusion   (no relu)
    pad_ref[:, 1:1 + h, :] = (xm + y).astype(pad_ref.dtype)
    out = _conv3x3_lane_dense(pad_ref, wf_ref, bf_ref[...], nb, h, wc, k_stack)
    out_ref[...] = out.astype(out_ref.dtype)


def _conv_band_mats(w_oihw, width, k_stack, dtype):
    """Fold a (C_out, C_in, 3, 3) conv weight into banded lane-dense matrices.

    Returns (3, W*C_in, W*C_out) (or K-stacked (3*W*C_in, W*C_out)) such that
        conv_out_row(h) = sum_dy padded_row(h + dy) @ M[dy]
    with 'same' zero padding along W handled by the band structure.
    """
    c_out, c_in, kh, kw = w_oihw.shape
    ind = np.zeros((kw, width, width), np.float32)      # ind[dx, w_in, w_out]
    for dx in range(kw):
        for wo in range(width):
            wi = wo + dx - kw // 2
            if 0 <= wi < width:
                ind[dx, wi, wo] = 1.0
    # m[dy, w_in, c_in, w_out, c_out] = w[c_out, c_in, dy, w_in - w_out + 1]
    m = jnp.einsum("xab,oiyx->yaibo", jnp.asarray(ind), w_oihw)
    m = m.reshape(kh, width * c_in, width * c_out)
    if k_stack:
        m = m.reshape(kh * width * c_in, width * c_out)
    return m.astype(dtype)


def _default_k_stack():
    """K=3*W*C single matmul on 256-deep MXUs (v6e/v7x); 3x(K=W*C) on v5/older."""
    try:
        kind = jax.devices()[0].device_kind.lower()
    except Exception:
        return True
    return not any(v in kind for v in ("v2", "v3", "v4", "v5"))


def _pick_nb(n, h, target_rows=256, min_steps=4):
    """Images per grid step: secure grid depth first (>= min(min_steps, n)
    steps so both TCs get work and DMAs overlap compute), then grow nb toward
    nb*h ~ target_rows MXU rows per push."""
    nb = 1
    for cand in range(2, n + 1):
        if n % cand:
            continue
        if n // cand < min(min_steps, n):
            continue
        if cand * h <= target_rows:
            nb = cand
    return nb


def fam_forward(x1_nchw, x2_nchw, params, nb=None, k_stack=None):
    """x1, x2: (N, C, H, W) float32.  Returns (N, C, H, W) float32."""
    N, C, H, W = x1_nchw.shape
    WC = W * C
    assert WC % 128 == 0, (
        "lane-dense layout needs W*C to be a multiple of 128 "
        "(otherwise the output store becomes masked vst.msk)")

    if k_stack is None:
        k_stack = _default_k_stack()
    if nb is None:
        nb = _pick_nb(N, H)

    # NCHW -> lane-dense (N, H, W*C).  Pure layout plumbing at the module
    # boundary; supply NHWC from the surrounding model to remove it.
    x1 = jnp.transpose(x1_nchw, (0, 2, 3, 1)).reshape(N, H, WC)
    x2 = jnp.transpose(x2_nchw, (0, 2, 3, 1)).reshape(N, H, WC)

    wdtype = jnp.bfloat16                               # MXU operands; f32 acc
    wm = _conv_band_mats(params["w_merge"], W, k_stack, wdtype)
    wf = _conv_band_mats(params["w_fusion"], W, k_stack, wdtype)
    bm = jnp.tile(params["b_merge"], W).reshape(1, WC)   # lane w*C+c -> b[c]
    bf = jnp.tile(params["b_fusion"], W).reshape(1, WC)
    coef = jnp.tile(params["coef"], (1, W))              # (2, WC)

    pad_rows = ((H + 2 + 7) // 8) * 8                    # sublane-aligned

    if k_stack:
        w_spec = pl.BlockSpec((3 * WC, WC), lambda n: (0, 0))
    else:
        w_spec = pl.BlockSpec((3, WC, WC), lambda n: (0, 0, 0))

    out = pl.pallas_call(
        functools.partial(fam_kernel, k_stack=k_stack),
        out_shape=jax.ShapeDtypeStruct((N, H, WC), jnp.float32),
        grid_spec=pltpu.PrefetchScalarGridSpec(
            num_scalar_prefetch=0,
            grid=(N // nb,),
            in_specs=[
                pl.BlockSpec((nb, H, WC), lambda n: (n, 0, 0)),
                pl.BlockSpec((nb, H, WC), lambda n: (n, 0, 0)),
                w_spec,
                pl.BlockSpec((1, WC), lambda n: (0, 0)),
                w_spec,
                pl.BlockSpec((1, WC), lambda n: (0, 0)),
                pl.BlockSpec((2, WC), lambda n: (0, 0)),
            ],
            out_specs=pl.BlockSpec((nb, H, WC), lambda n: (n, 0, 0)),
            # Single persistent pad scratch (bf16), reused by both convs.
            scratch_shapes=[pltpu.VMEM((nb, pad_rows, WC), jnp.bfloat16)],
        ),
        compiler_params=pltpu.CompilerParams(
            dimension_semantics=("parallel",)),   # batch axis: megacore shard
    )(x1, x2, wm, bm, wf, bf, coef)

    # lane-dense -> NCHW (reshape is free; transpose is the boundary relayout)
    return jnp.transpose(out.reshape(N, H, W, C), (0, 3, 1, 2))


def fam_reference(x1, x2, params):
    """Pure-JAX NCHW reference (mirrors the PyTorch module, full f32)."""
    def conv(x, w, b):
        out = jax.lax.conv_general_dilated(
            x, w, window_strides=(1, 1), padding=((1, 1), (1, 1)),
            dimension_numbers=("NCHW", "OIHW", "NCHW"))
        return out + b[None, :, None, None]

    xm = jax.nn.relu(conv(x1 * x2, params["w_merge"], params["b_merge"]))
    coef = params["coef"]
    y = coef[0][None, :, None, None] * x1 + coef[1][None, :, None, None] * x2
    return conv(xm + y, params["w_fusion"], params["b_fusion"])


def init_params(key, channel):
    k1, k2, k3, k4, k5 = jax.random.split(key, 5)
    return {
        "w_merge": 0.1 * jax.random.normal(k1, (channel, channel, 3, 3), jnp.float32),
        "b_merge": 0.01 * jax.random.normal(k2, (channel,), jnp.float32),
        "w_fusion": 0.1 * jax.random.normal(k3, (channel, channel, 3, 3), jnp.float32),
        "b_fusion": 0.01 * jax.random.normal(k4, (channel,), jnp.float32),
        # module init is ones((2, C)); perturb so the per-channel broadcast is exercised
        "coef": 1.0 + 0.1 * jax.random.normal(k5, (2, channel), jnp.float32),
    }


if __name__ == "__main__":
    N, C, H, W = 2, 8, 16, 16          # W*C = 128 -> fully lane-dense
    key = jax.random.PRNGKey(0)
    kx1, kx2, kp = jax.random.split(key, 3)

    x1 = jax.random.normal(kx1, (N, C, H, W), jnp.float32)
    x2 = jax.random.normal(kx2, (N, C, H, W), jnp.float32)
    params = init_params(kp, C)

    out = jax.block_until_ready(fam_forward(x1, x2, params))
    ref = jax.block_until_ready(fam_reference(x1, x2, params))

    # bf16 MXU operands with f32 accumulation -> loosened tolerance vs f32 ref.
    np.testing.assert_allclose(np.asarray(out), np.asarray(ref),
                               rtol=3e-2, atol=3e-2)
    print("KERNEL_OK")
</pallas_src>

<mosaic_0001>
module attributes {stable_mosaic.version = 11 : i64} {
  func.func @fam_kernel(%arg0: i32, %arg1: memref<1x16x128xf32, #tpu.memory_space<vmem>>, %arg2: memref<1x16x128xf32, #tpu.memory_space<vmem>>, %arg3: memref<384x128xbf16, #tpu.memory_space<vmem>>, %arg4: memref<1x128xf32, #tpu.memory_space<vmem>>, %arg5: memref<384x128xbf16, #tpu.memory_space<vmem>>, %arg6: memref<1x128xf32, #tpu.memory_space<vmem>>, %arg7: memref<2x128xf32, #tpu.memory_space<vmem>>, %arg8: memref<1x16x128xf32, #tpu.memory_space<vmem>>, %arg9: memref<1x24x128xbf16, #tpu.memory_space<vmem>>) attributes {dimension_semantics = [#tpu.dimension_semantics<parallel>], iteration_bounds = array<i64: 2>, scalar_prefetch = 0 : i64, scratch_operands = 1 : i64, tpu.core_type = #tpu.core_type<tc>, window_params = [{transform_indices = @transform_0, window_bounds = array<i64: 1, 16, 128>}, {transform_indices = @transform_1, window_bounds = array<i64: 1, 16, 128>}, {pipeline_mode = #tpu.pipeline_mode<synchronous>, transform_indices = @transform_2, window_bounds = array<i64: 384, 128>}, {pipeline_mode = #tpu.pipeline_mode<synchronous>, transform_indices = @transform_3, window_bounds = array<i64: 1, 128>}, {pipeline_mode = #tpu.pipeline_mode<synchronous>, transform_indices = @transform_4, window_bounds = array<i64: 384, 128>}, {pipeline_mode = #tpu.pipeline_mode<synchronous>, transform_indices = @transform_5, window_bounds = array<i64: 1, 128>}, {pipeline_mode = #tpu.pipeline_mode<synchronous>, transform_indices = @transform_6, window_bounds = array<i64: 2, 128>}, {transform_indices = @transform_7, window_bounds = array<i64: 1, 16, 128>}]} {
    %cst = arith.constant 0.000000e+00 : bf16
    %0 = vector.broadcast %cst : bf16 to vector<1x1x128xbf16>
    %c0 = arith.constant 0 : index
    %c0_0 = arith.constant 0 : index
    %c0_1 = arith.constant 0 : index
    %1 = vector.load %arg9[%c0, %c0_0, %c0_1] : memref<1x24x128xbf16, #tpu.memory_space<vmem>>, vector<1x1x128xbf16>
    tpu.vector_store %arg9[%c0, %c0_0, %c0_1], %0 {strides = array<i32>} : memref<1x24x128xbf16, #tpu.memory_space<vmem>>, vector<1x1x128xbf16>,
    %c0_2 = arith.constant 0 : index
    %c17 = arith.constant 17 : index
    %c0_3 = arith.constant 0 : index
    %2 = vector.load %arg9[%c0_2, %c17, %c0_3] : memref<1x24x128xbf16, #tpu.memory_space<vmem>>, vector<1x1x128xbf16>
    tpu.vector_store %arg9[%c0_2, %c17, %c0_3], %0 {strides = array<i32>} : memref<1x24x128xbf16, #tpu.memory_space<vmem>>, vector<1x1x128xbf16>,
    %c0_4 = arith.constant 0 : index
    %c0_5 = arith.constant 0 : index
    %c0_6 = arith.constant 0 : index
    %3 = vector.load %arg1[%c0_4, %c0_5, %c0_6] : memref<1x16x128xf32, #tpu.memory_space<vmem>>, vector<1x16x128xf32>
    %c0_7 = arith.constant 0 : index
    %c0_8 = arith.constant 0 : index
    %c0_9 = arith.constant 0 : index
    %4 = vector.load %arg2[%c0_7, %c0_8, %c0_9] : memref<1x16x128xf32, #tpu.memory_space<vmem>>, vector<1x16x128xf32>
    %5 = arith.mulf %3, %4 : vector<1x16x128xf32>
    %6 = arith.truncf %5 : vector<1x16x128xf32> to vector<1x16x128xbf16>
    %c0_10 = arith.constant 0 : index
    %c1 = arith.constant 1 : index
    %c0_11 = arith.constant 0 : index
    %7 = vector.load %arg9[%c0_10, %c1, %c0_11] : memref<1x24x128xbf16, #tpu.memory_space<vmem>>, vector<1x16x128xbf16>
    tpu.vector_store %arg9[%c0_10, %c1, %c0_11], %6 {strides = array<i32>} : memref<1x24x128xbf16, #tpu.memory_space<vmem>>, vector<1x16x128xbf16>,
    %c0_12 = arith.constant 0 : index
    %c0_13 = arith.constant 0 : index
    %8 = vector.load %arg4[%c0_12, %c0_13] : memref<1x128xf32, #tpu.memory_space<vmem>>, vector<1x128xf32>
    %9 = vector.shape_cast %8 : vector<1x128xf32> to vector<1x128xf32>
    %10 = vector.broadcast %9 : vector<1x128xf32> to vector<16x128xf32>
    %c0_14 = arith.constant 0 : index
    %c0_15 = arith.constant 0 : index
    %c0_16 = arith.constant 0 : index
    %11 = vector.load %arg9[%c0_14, %c0_15, %c0_16] : memref<1x24x128xbf16, #tpu.memory_space<vmem>>, vector<1x16x128xbf16>
    %12 = vector.shape_cast %11 : vector<1x16x128xbf16> to vector<16x128xbf16>
    %c0_17 = arith.constant 0 : index
    %c1_18 = arith.constant 1 : index
    %c0_19 = arith.constant 0 : index
    %13 = vector.load %arg9[%c0_17, %c1_18, %c0_19] : memref<1x24x128xbf16, #tpu.memory_space<vmem>>, vector<1x16x128xbf16>
    %14 = vector.shape_cast %13 : vector<1x16x128xbf16> to vector<16x128xbf16>
    %c0_20 = arith.constant 0 : index
    %c2 = arith.constant 2 : index
    %c0_21 = arith.constant 0 : index
    %15 = vector.load %arg9[%c0_20, %c2, %c0_21] : memref<1x24x128xbf16, #tpu.memory_space<vmem>>, vector<1x16x128xbf16>
    %16 = vector.shape_cast %15 : vector<1x16x128xbf16> to vector<16x128xbf16>
    %17 = tpu.concatenate %12, %14, %16 in 1 : vector<16x128xbf16>, vector<16x128xbf16>, vector<16x128xbf16> -> vector<16x384xbf16>
    %c0_22 = arith.constant 0 : index
    %c0_23 = arith.constant 0 : index
    %18 = vector.load %arg3[%c0_22, %c0_23] : memref<384x128xbf16, #tpu.memory_space<vmem>>, vector<384x128xbf16>
    %cst_24 = arith.constant dense<0.000000e+00> : vector<16x128xf32>
    %19 = tpu.matmul %17, %18, %cst_24 {dimension_numbers = #tpu.dot_dimension_numbers<[1], [0], [0], [1], [0, 0, 1, 1], [], []>} : vector<16x384xbf16>, vector<384x128xbf16>, vector<16x128xf32> -> vector<16x128xf32>
    %20 = arith.addf %10, %19 : vector<16x128xf32>
    %21 = vector.shape_cast %20 : vector<16x128xf32> to vector<1x16x128xf32>
    %cst_25 = arith.constant 0.000000e+00 : f32
    %22 = vector.broadcast %cst_25 : f32 to vector<1x16x128xf32>
    %23 = arith.maximumf %21, %22 : vector<1x16x128xf32>
    %c0_26 = arith.constant 0 : index
    %c0_27 = arith.constant 0 : index
    %24 = vector.load %arg7[%c0_26, %c0_27] : memref<2x128xf32, #tpu.memory_space<vmem>>, vector<1x128xf32>
    %25 = vector.shape_cast %24 : vector<1x128xf32> to vector<1x1x128xf32>
    %26 = vector.broadcast %25 : vector<1x1x128xf32> to vector<1x16x128xf32>
    %27 = arith.mulf %26, %3 : vector<1x16x128xf32>
    %c1_28 = arith.constant 1 : index
    %c0_29 = arith.constant 0 : index
    %28 = vector.load %arg7[%c1_28, %c0_29] : memref<2x128xf32, #tpu.memory_space<vmem>>, vector<1x128xf32>
    %29 = vector.shape_cast %28 : vector<1x128xf32> to vector<1x1x128xf32>
    %30 = vector.broadcast %29 : vector<1x1x128xf32> to vector<1x16x128xf32>
    %31 = arith.mulf %30, %4 : vector<1x16x128xf32>
    %32 = arith.addf %27, %31 : vector<1x16x128xf32>
    %33 = arith.addf %23, %32 : vector<1x16x128xf32>
    %34 = arith.truncf %33 : vector<1x16x128xf32> to vector<1x16x128xbf16>
    %c0_30 = arith.constant 0 : index
    %c1_31 = arith.constant 1 : index
    %c0_32 = arith.constant 0 : index
    %35 = vector.load %arg9[%c0_30, %c1_31, %c0_32] : memref<1x24x128xbf16, #tpu.memory_space<vmem>>, vector<1x16x128xbf16>
    tpu.vector_store %arg9[%c0_30, %c1_31, %c0_32], %34 {strides = array<i32>} : memref<1x24x128xbf16, #tpu.memory_space<vmem>>, vector<1x16x128xbf16>,
    %c0_33 = arith.constant 0 : index
    %c0_34 = arith.constant 0 : index
    %36 = vector.load %arg6[%c0_33, %c0_34] : memref<1x128xf32, #tpu.memory_space<vmem>>, vector<1x128xf32>
    %37 = vector.shape_cast %36 : vector<1x128xf32> to vector<1x128xf32>
    %38 = vector.broadcast %37 : vector<1x128xf32> to vector<16x128xf32>
    %c0_35 = arith.constant 0 : index
    %c0_36 = arith.constant 0 : index
    %c0_37 = arith.constant 0 : index
    %39 = vector.load %arg9[%c0_35, %c0_36, %c0_37] : memref<1x24x128xbf16, #tpu.memory_space<vmem>>, vector<1x16x128xbf16>
    %40 = vector.shape_cast %39 : vector<1x16x128xbf16> to vector<16x128xbf16>
    %c0_38 = arith.constant 0 : index
    %c1_39 = arith.constant 1 : index
    %c0_40 = arith.constant 0 : index
    %41 = vector.load %arg9[%c0_38, %c1_39, %c0_40] : memref<1x24x128xbf16, #tpu.memory_space<vmem>>, vector<1x16x128xbf16>
    %42 = vector.shape_cast %41 : vector<1x16x128xbf16> to vector<16x128xbf16>
    %c0_41 = arith.constant 0 : index
    %c2_42 = arith.constant 2 : index
    %c0_43 = arith.constant 0 : index
    %43 = vector.load %arg9[%c0_41, %c2_42, %c0_43] : memref<1x24x128xbf16, #tpu.memory_space<vmem>>, vector<1x16x128xbf16>
    %44 = vector.shape_cast %43 : vector<1x16x128xbf16> to vector<16x128xbf16>
    %45 = tpu.concatenate %40, %42, %44 in 1 : vector<16x128xbf16>, vector<16x128xbf16>, vector<16x128xbf16> -> vector<16x384xbf16>
    %c0_44 = arith.constant 0 : index
    %c0_45 = arith.constant 0 : index
    %46 = vector.load %arg5[%c0_44, %c0_45] : memref<384x128xbf16, #tpu.memory_space<vmem>>, vector<384x128xbf16>
    %cst_46 = arith.constant dense<0.000000e+00> : vector<16x128xf32>
    %47 = tpu.matmul %45, %46, %cst_46 {dimension_numbers = #tpu.dot_dimension_numbers<[1], [0], [0], [1], [0, 0, 1, 1], [], []>} : vector<16x384xbf16>, vector<384x128xbf16>, vector<16x128xf32> -> vector<16x128xf32>
    %48 = arith.addf %38, %47 : vector<16x128xf32>
    %49 = vector.shape_cast %48 : vector<16x128xf32> to vector<1x16x128xf32>
    %c0_47 = arith.constant 0 : index
    %c0_48 = arith.constant 0 : index
    %c0_49 = arith.constant 0 : index
    %50 = vector.load %arg8[%c0_47, %c0_48, %c0_49] : memref<1x16x128xf32, #tpu.memory_space<vmem>>, vector<1x16x128xf32>
    tpu.vector_store %arg8[%c0_47, %c0_48, %c0_49], %49 {strides = array<i32>} : memref<1x16x128xf32, #tpu.memory_space<vmem>>, vector<1x16x128xf32>,
    return
  }
  func.func @transform_0(%arg0: i32) -> (i32, i32, i32) {
    %c0_i32 = arith.constant 0 : i32
    %c0_i32_0 = arith.constant 0 : i32
    %c0_i32_1 = arith.constant 0 : i32
    return %arg0, %c0_i32, %c0_i32_0 : i32, i32, i32
  }
  func.func @transform_1(%arg0: i32) -> (i32, i32, i32) {
    %c0_i32 = arith.constant 0 : i32
    %c0_i32_0 = arith.constant 0 : i32
    %c0_i32_1 = arith.constant 0 : i32
    return %arg0, %c0_i32, %c0_i32_0 : i32, i32, i32
  }
  func.func @transform_2(%arg0: i32) -> (i32, i32) {
    %c0_i32 = arith.constant 0 : i32
    %c0_i32_0 = arith.constant 0 : i32
    %c0_i32_1 = arith.constant 0 : i32
    return %c0_i32, %c0_i32_0 : i32, i32
  }
  func.func @transform_3(%arg0: i32) -> (i32, i32) {
    %c0_i32 = arith.constant 0 : i32
    %c0_i32_0 = arith.constant 0 : i32
    %c0_i32_1 = arith.constant 0 : i32
    return %c0_i32, %c0_i32_0 : i32, i32
  }
  func.func @transform_4(%arg0: i32) -> (i32, i32) {
    %c0_i32 = arith.constant 0 : i32
    %c0_i32_0 = arith.constant 0 : i32
    %c0_i32_1 = arith.constant 0 : i32
    return %c0_i32, %c0_i32_0 : i32, i32
  }
  func.func @transform_5(%arg0: i32) -> (i32, i32) {
    %c0_i32 = arith.constant 0 : i32
    %c0_i32_0 = arith.constant 0 : i32
    %c0_i32_1 = arith.constant 0 : i32
    return %c0_i32, %c0_i32_0 : i32, i32
  }
  func.func @transform_6(%arg0: i32) -> (i32, i32) {
    %c0_i32 = arith.constant 0 : i32
    %c0_i32_0 = arith.constant 0 : i32
    %c0_i32_1 = arith.constant 0 : i32
    return %c0_i32, %c0_i32_0 : i32, i32
  }
  func.func @transform_7(%arg0: i32) -> (i32, i32, i32) {
    %c0_i32 = arith.constant 0 : i32
    %c0_i32_0 = arith.constant 0 : i32
    %c0_i32_1 = arith.constant 0 : i32
    return %arg0, %c0_i32, %c0_i32_0 : i32, i32, i32
  }
}

</mosaic_0001>

<llo_original>
// kernel: tpu_custom_call.1
$region0: #{tpu_custom_call.1}
  #allocation0 [shape = 'u32[]', space=smem, size = 0x4, offset = 0x4, fixed_abs, tag = 'smem constant byte address 0x4 - core index']
  #allocation1 [shape = 'u32[144,128]{1,0:T(1,128)}', space=vmem, size = 0x12000, scoped, tag = 'internal scratch']
  #allocation2 [shape = 'bf16[1,24,128]{2,1,0:T(8,128)(2,1)}', space=vmem, size = 0x1800, scoped, tag = 'scratch operand']
  %s0 = inlined_call_operand.hbm [shape: f32[2,16,128], index: 0, kind: input, shape index: {}]
  %s1 = inlined_call_operand.hbm [shape: f32[2,16,128], index: 1, kind: input, shape index: {}]
  %s2 = inlined_call_operand.hbm [shape: bf16[384,128], index: 2, kind: input, shape index: {}]
  %s3 = inlined_call_operand.vmem [shape: f32[1,128], index: 3, kind: input, shape index: {}]
  %s4 = inlined_call_operand.hbm [shape: bf16[384,128], index: 4, kind: input, shape index: {}]
  %s5 = inlined_call_operand.vmem [shape: f32[1,128], index: 5, kind: input, shape index: {}]
  %s6 = inlined_call_operand.vmem [shape: f32[2,128], index: 6, kind: input, shape index: {}]
  %s7 = inlined_call_operand.hbm [shape: f32[2,16,128], index: 7, kind: output, shape index: {}]
  %s8 = sld [smem:[#allocation0]]
  $region77: #{tpu_custom_call.1} parent=0
    _
  %s10 = ssub.s32 1, %s8
  %s11 = scalar_select 0, %s10, %s8
  $region1: #{tpu_custom_call.1} parent=0
    #allocation3 [shape = 'u8[16384]{0}', space=vmem, size = 0x4000, scoped, tag = 'input window, operand 0']
    #allocation4 [shape = 's32[2]{0}', space=sflag, size = 0x8, scoped, tag = 'scoped memory for tpu_custom_call.1']
    #allocation5 [shape = 's32[2]{0}', space=sflag, size = 0x8, scoped, tag = 'scoped memory for tpu_custom_call.1']
    #allocation6 [shape = 'u8[16384]{0}', space=vmem, size = 0x4000, scoped, tag = 'input window, operand 1']
    #allocation7 [shape = 's32[2]{0}', space=sflag, size = 0x8, scoped, tag = 'scoped memory for tpu_custom_call.1']
    #allocation8 [shape = 'u8[98304]{0}', space=vmem, size = 0x18000, scoped, tag = 'input window, operand 2, single buffered']
    #allocation9 [shape = 'u8[98304]{0}', space=vmem, size = 0x18000, scoped, tag = 'input window, operand 4, single buffered']
    #allocation10 [shape = 's32[1]{0}', space=sflag, size = 0x4, scoped, tag = 'scoped memory for tpu_custom_call.1']
    #allocation11 [shape = 'u8[16384]{0}', space=vmem, size = 0x4000, scoped, tag = 'output window, operand 0']
    %12 = vsyncpa [#allocation4], 0
    %s13 = scalar_lea.sflag [#allocation4], 1
    %14 = vsyncpa %s13, 0
    %15 = vsyncpa [#allocation7], 0
    %s16 = scalar_lea.sflag [#allocation7], 1
    %17 = vsyncpa %s16, 0
    %18 = vsyncpa [#allocation10], 0
    %19 = vsyncpa [#allocation5], 0
    %s20 = scalar_lea.sflag [#allocation5], 1
    %21 = vsyncpa %s20, 0
    loop: start=0, step=1, limit=4
    $region2: #{tpu_custom_call.1} parent=1 // loop_pre_header
      _
    $region3: #{tpu_custom_call.1} parent=1 // loop_header
      %s23 = sphi 0, %s27
      %p24 = scmp.ge.s32.totalorder %s23, 4
      %s33 = sphi 0, %s35
      %s36 = sphi 0, %s33
      %s37 = sphi 0, %s36
      %s53 = sphi 0, %s37
      %s59 = sphi 0, %s61
      %s62 = sphi 0, %s59
      %s63 = sphi 0, %s62
      %s79 = sphi 0, %s63
      %s83 = sphi 0, %s83
      %s85 = sphi 0, %s83
      %s86 = sphi 0, %s85
      %s100 = sphi 0, %s86
      %s104 = sphi 0, %s104
      %s106 = sphi 0, %s104
      %s107 = sphi 0, %s106
      %s121 = sphi 0, %s107
      %s125 = sphi 0, %s125
      %s127 = sphi 0, %s125
      %s128 = sphi 0, %s127
      %s142 = sphi 0, %s128
      %s146 = sphi 0, %s146
      %s148 = sphi 0, %s146
      %s149 = sphi 0, %s148
      %s163 = sphi 0, %s149
      %s167 = sphi 0, %s167
      %s169 = sphi 0, %s167
      %s170 = sphi 0, %s169
      %s184 = sphi 0, %s170
      %s190 = sphi 0, %s192
      %s193 = sphi 0, %s190
      %s194 = sphi 0, %s193
      %s210 = sphi 0, %s194
    $region4: #{tpu_custom_call.1} parent=1 // loop_header_branch
      %26 = sbr.rel (%p24) target = $region8
    $region5: #{tpu_custom_call.1} parent=1 // loop_body
      %s28 = ssub.s32 %s23, 1
      %s29 = ssub.s32 %s23, 2
      %s30 = sadd.s32 %s23, 1
      %s31 = ssub.s32 %s23, %s30
      %p32 = scmp.eq.s32.totalorder %s31, 0
      %s34 = sadd.s32 %s33, 1
      %s35 = scalar_select %p32, %s33, %s34
      %p38 = pneg %p32
      %p39 = scmp.eq.s32.totalorder %s23, 1
      %p40 = por %p38, %p39
      %p41 = scmp.ne.s32.totalorder %s33, %s36
      %p42 = scmp.eq.s32.totalorder %s23, 0
      %p43 = por %p41, %p42
      %p44 = scmp.ne.s32.totalorder %s33, %s36
      %p45 = scmp.eq.s32.totalorder %s28, 1
      %p46 = por %p44, %p45
      %p47 = scmp.ne.s32.totalorder %s36, %s37
      %p48 = scmp.eq.s32.totalorder %s28, 0
      %p49 = por %p47, %p48
      %p50 = scmp.ne.s32.totalorder %s36, %s37
      %p51 = scmp.eq.s32.totalorder %s29, 1
      %p52 = por %p50, %p51
      %p54 = scmp.ne.s32.totalorder %s37, %s53
      %p55 = scmp.eq.s32.totalorder %s29, 0
      %p56 = por %p54, %p55
      %s57 = ssub.s32 %s23, %s30
      %p58 = scmp.eq.s32.totalorder %s57, 0
      %s60 = sadd.s32 %s59, 1
      %s61 = scalar_select %p58, %s59, %s60
      %p64 = pneg %p58
      %p65 = scmp.eq.s32.totalorder %s23, 1
      %p66 = por %p64, %p65
      %p67 = scmp.ne.s32.totalorder %s59, %s62
      %p68 = scmp.eq.s32.totalorder %s23, 0
      %p69 = por %p67, %p68
      %p70 = scmp.ne.s32.totalorder %s59, %s62
      %p71 = scmp.eq.s32.totalorder %s28, 1
      %p72 = por %p70, %p71
      %p73 = scmp.ne.s32.totalorder %s62, %s63
      %p74 = scmp.eq.s32.totalorder %s28, 0
      %p75 = por %p73, %p74
      %p76 = scmp.ne.s32.totalorder %s62, %s63
      %p77 = scmp.eq.s32.totalorder %s29, 1
      %p78 = por %p76, %p77
      %p80 = scmp.ne.s32.totalorder %s63, %s79
      %p81 = scmp.eq.s32.totalorder %s29, 0
      %p82 = por %p80, %p81
      %s84 = sadd.s32 %s83, 1
      %p87 = scmp.eq.s32.totalorder %s23, 1
      %p88 = scmp.ne.s32.totalorder %s83, %s85
      %p89 = scmp.eq.s32.totalorder %s23, 0
      %p90 = por %p88, %p89
      %p91 = scmp.ne.s32.totalorder %s83, %s85
      %p92 = scmp.eq.s32.totalorder %s28, 1
      %p93 = por %p91, %p92
      %p94 = scmp.ne.s32.totalorder %s85, %s86
      %p95 = scmp.eq.s32.totalorder %s28, 0
      %p96 = por %p94, %p95
      %p97 = scmp.ne.s32.totalorder %s85, %s86
      %p98 = scmp.eq.s32.totalorder %s29, 1
      %p99 = por %p97, %p98
      %p101 = scmp.ne.s32.totalorder %s86, %s100
      %p102 = scmp.eq.s32.totalorder %s29, 0
      %p103 = por %p101, %p102
      %s105 = sadd.s32 %s104, 1
      %p108 = scmp.eq.s32.totalorder %s23, 1
      %p109 = scmp.ne.s32.totalorder %s104, %s106
      %p110 = scmp.eq.s32.totalorder %s23, 0
      %p111 = por %p109, %p110
      %p112 = scmp.ne.s32.totalorder %s104, %s106
      %p113 = scmp.eq.s32.totalorder %s28, 1
      %p114 = por %p112, %p113
      %p115 = scmp.ne.s32.totalorder %s106, %s107
      %p116 = scmp.eq.s32.totalorder %s28, 0
      %p117 = por %p115, %p116
      %p118 = scmp.ne.s32.totalorder %s106, %s107
      %p119 = scmp.eq.s32.totalorder %s29, 1
      %p120 = por %p118, %p119
      %p122 = scmp.ne.s32.totalorder %s107, %s121
      %p123 = scmp.eq.s32.totalorder %s29, 0
      %p124 = por %p122, %p123
      %s126 = sadd.s32 %s125, 1
      %p129 = scmp.eq.s32.totalorder %s23, 1
      %p130 = scmp.ne.s32.totalorder %s125, %s127
      %p131 = scmp.eq.s32.totalorder %s23, 0
      %p132 = por %p130, %p131
      %p133 = scmp.ne.s32.totalorder %s125, %s127
      %p134 = scmp.eq.s32.totalorder %s28, 1
      %p135 = por %p133, %p134
      %p136 = scmp.ne.s32.totalorder %s127, %s128
      %p137 = scmp.eq.s32.totalorder %s28, 0
      %p138 = por %p136, %p137
      %p139 = scmp.ne.s32.totalorder %s127, %s128
      %p140 = scmp.eq.s32.totalorder %s29, 1
      %p141 = por %p139, %p140
      %p143 = scmp.ne.s32.totalorder %s128, %s142
      %p144 = scmp.eq.s32.totalorder %s29, 0
      %p145 = por %p143, %p144
      %s147 = sadd.s32 %s146, 1
      %p150 = scmp.eq.s32.totalorder %s23, 1
      %p151 = scmp.ne.s32.totalorder %s146, %s148
      %p152 = scmp.eq.s32.totalorder %s23, 0
      %p153 = por %p151, %p152
      %p154 = scmp.ne.s32.totalorder %s146, %s148
      %p155 = scmp.eq.s32.totalorder %s28, 1
      %p156 = por %p154, %p155
      %p157 = scmp.ne.s32.totalorder %s148, %s149
      %p158 = scmp.eq.s32.totalorder %s28, 0
      %p159 = por %p157, %p158
      %p160 = scmp.ne.s32.totalorder %s148, %s149
      %p161 = scmp.eq.s32.totalorder %s29, 1
      %p162 = por %p160, %p161
      %p164 = scmp.ne.s32.totalorder %s149, %s163
      %p165 = scmp.eq.s32.totalorder %s29, 0
      %p166 = por %p164, %p165
      %s168 = sadd.s32 %s167, 1
      %p171 = scmp.eq.s32.totalorder %s23, 1
      %p172 = scmp.ne.s32.totalorder %s167, %s169
      %p173 = scmp.eq.s32.totalorder %s23, 0
      %p174 = por %p172, %p173
      %p175 = scmp.ne.s32.totalorder %s167, %s169
      %p176 = scmp.eq.s32.totalorder %s28, 1
      %p177 = por %p175, %p176
      %p178 = scmp.ne.s32.totalorder %s169, %s170
      %p179 = scmp.eq.s32.totalorder %s28, 0
      %p180 = por %p178, %p179
      %p181 = scmp.ne.s32.totalorder %s169, %s170
      %p182 = scmp.eq.s32.totalorder %s29, 1
      %p183 = por %p181, %p182
      %p185 = scmp.ne.s32.totalorder %s170, %s184
      %p186 = scmp.eq.s32.totalorder %s29, 0
      %p187 = por %p185, %p186
      %s188 = ssub.s32 %s23, %s30
      %p189 = scmp.eq.s32.totalorder %s188, 0
      %s191 = sadd.s32 %s190, 1
      %s192 = scalar_select %p189, %s190, %s191
      %p195 = pneg %p189
      %p196 = scmp.eq.s32.totalorder %s23, 1
      %p197 = por %p195, %p196
      %p198 = scmp.ne.s32.totalorder %s190, %s193
      %p199 = scmp.eq.s32.totalorder %s23, 0
      %p200 = por %p198, %p199
      %p201 = scmp.ne.s32.totalorder %s190, %s193
      %p202 = scmp.eq.s32.totalorder %s28, 1
      %p203 = por %p201, %p202
      %p204 = scmp.ne.s32.totalorder %s193, %s194
      %p205 = scmp.eq.s32.totalorder %s28, 0
      %p206 = por %p204, %p205
      %p207 = scmp.ne.s32.totalorder %s193, %s194
      %p208 = scmp.eq.s32.totalorder %s29, 1
      %p209 = por %p207, %p208
      %p211 = scmp.ne.s32.totalorder %s194, %s210
      %p212 = scmp.eq.s32.totalorder %s29, 0
      %p213 = por %p211, %p212
      %p214 = scmp.le.s32.totalorder 1, %s23
      %p215 = scmp.lt.s32.totalorder %s23, 3
      %p216 = pnand %p214, %p215
      %p217 = pneg %p216
      // Predicated region
      $region9: #{tpu_custom_call.1} parent=5 // pred_check
        _
      $region10: #{tpu_custom_call.1} parent=5 // pred_check_branch
        %219 = sbr.rel (%p216) target = $region12
      $region11: #{tpu_custom_call.1} parent=5 // pred_region
        %s220 = ssub.s32 %s23, 1
        // Predicated region
        $region13: #{tpu_custom_call.1} parent=11 // pred_check
          %p221 = pneg %p96
        $region14: #{tpu_custom_call.1} parent=11 // pred_check_branch
          %223 = sbr.rel (%p221) target = $region16
        $region15: #{tpu_custom_call.1} parent=11 // pred_region
          %s225 = ssub.s32 3072, 3072
          %226 = vsyncadd [#allocation7], %s225
          %s227 = sshll.u32 [#allocation8], 4
          %s228 = int_to_ptr.vmem [resolvable:$true] %s227
          %233 = dma.hbm_to_vmem [thread:$0]  %s2, 3072, %s228, [#allocation7], 64, 64, 4
        $region16: #{tpu_custom_call.1} parent=11 // pred_fallthru
          _
        // Predicated region
        $region17: #{tpu_custom_call.1} parent=11 // pred_check
          %p234 = pneg %p117
        $region18: #{tpu_custom_call.1} parent=11 // pred_check_branch
          %236 = sbr.rel (%p234) target = $region20
        $region19: #{tpu_custom_call.1} parent=11 // pred_region
          _
        $region20: #{tpu_custom_call.1} parent=11 // pred_fallthru
          _
        // Predicated region
        $region21: #{tpu_custom_call.1} parent=11 // pred_check
          %p237 = pneg %p138
        $region22: #{tpu_custom_call.1} parent=11 // pred_check_branch
          %239 = sbr.rel (%p237) target = $region24
        $region23: #{tpu_custom_call.1} parent=11 // pred_region
          %s241 = ssub.s32 3072, 3072
          %242 = vsyncadd [#allocation10], %s241
          %s243 = sshll.u32 [#allocation9], 4
          %s244 = int_to_ptr.vmem [resolvable:$true] %s243
          %249 = dma.hbm_to_vmem [thread:$0]  %s4, 3072, %s244, [#allocation10], 64, 64, 4
        $region24: #{tpu_custom_call.1} parent=11 // pred_fallthru
          _
        // Predicated region
        $region25: #{tpu_custom_call.1} parent=11 // pred_check
          %p250 = pneg %p159
        $region26: #{tpu_custom_call.1} parent=11 // pred_check_branch
          %252 = sbr.rel (%p250) target = $region28
        $region27: #{tpu_custom_call.1} parent=11 // pred_region
          _
        $region28: #{tpu_custom_call.1} parent=11 // pred_fallthru
          _
        // Predicated region
        $region29: #{tpu_custom_call.1} parent=11 // pred_check
          %p253 = pneg %p180
        $region30: #{tpu_custom_call.1} parent=11 // pred_check_branch
          %255 = sbr.rel (%p253) target = $region32
        $region31: #{tpu_custom_call.1} parent=11 // pred_region
          _
        $region32: #{tpu_custom_call.1} parent=11 // pred_fallthru
          _
      $region12: #{tpu_custom_call.1} parent=5 // pred_fallthru
        _
      %p256 = scmp.lt.s32.totalorder %s23, 2
      // Predicated region
      $region33: #{tpu_custom_call.1} parent=5 // pred_check
        %p257 = pneg %p256
      $region34: #{tpu_custom_call.1} parent=5 // pred_check_branch
        %259 = sbr.rel (%p257) target = $region36
      $region35: #{tpu_custom_call.1} parent=5 // pred_region
        // Predicated region
        $region37: #{tpu_custom_call.1} parent=35 // pred_check
          %p260 = pneg %p43
        $region38: #{tpu_custom_call.1} parent=35 // pred_check_branch
          %262 = sbr.rel (%p260) target = $region40
        $region39: #{tpu_custom_call.1} parent=35 // pred_region
          %s263 = sand.u32 %s33, 1
          %s264 = scalar_lea.sflag [#allocation4], %s263
          %s265 = sand.u32 %s33, 1
          %s266 = smul.addr %s265, 16
          %s267 = scalar_lea.vmem [#allocation3], %s266
          %s269 = ssub.s32 256, 256
          %270 = vsyncadd %s264, %s269
          %s271 = smul.addr %s23, 2
          %s272 = smul.addr %s271, 128
          %s273 = scalar_lea.hbm %s0, %s272
          %s274 = sshll.u32 %s267, 4
          %s275 = int_to_ptr.vmem [resolvable:$true] %s274
          %280 = dma.hbm_to_vmem [thread:$0]  %s273, 256, %s275, %s264, 128, 128, 8
        $region40: #{tpu_custom_call.1} parent=35 // pred_fallthru
          _
        // Predicated region
        $region41: #{tpu_custom_call.1} parent=35 // pred_check
          %p281 = pneg %p69
        $region42: #{tpu_custom_call.1} parent=35 // pred_check_branch
          %283 = sbr.rel (%p281) target = $region44
        $region43: #{tpu_custom_call.1} parent=35 // pred_region
          %s284 = sand.u32 %s23, 1
          %s285 = scalar_lea.sflag [#allocation7], %s284
          %s286 = sand.u32 %s59, 1
          %s287 = smul.addr %s286, 16
          %s288 = scalar_lea.vmem [#allocation6], %s287
          %s290 = ssub.s32 256, 256
          %291 = vsyncadd %s285, %s290
          %s292 = smul.addr %s23, 2
          %s293 = smul.addr %s292, 128
          %s294 = scalar_lea.hbm %s1, %s293
          %s295 = sshll.u32 %s288, 4
          %s296 = int_to_ptr.vmem [resolvable:$true] %s295
          %301 = dma.hbm_to_vmem [thread:$0]  %s294, 256, %s296, %s285, 128, 128, 8
        $region44: #{tpu_custom_call.1} parent=35 // pred_fallthru
          _
      $region36: #{tpu_custom_call.1} parent=5 // pred_fallthru
        _
      %p302 = scmp.le.s32.totalorder 1, %s23
      %p303 = scmp.lt.s32.totalorder %s23, 3
      %p304 = pnand %p302, %p303
      %p305 = pneg %p304
      // Predicated region
      $region45: #{tpu_custom_call.1} parent=5 // pred_check
        _
      $region46: #{tpu_custom_call.1} parent=5 // pred_check_branch
        %307 = sbr.rel (%p304) target = $region48
      $region47: #{tpu_custom_call.1} parent=5 // pred_region
        %s308 = ssub.s32 %s23, 1
        %s309 = sand.u32 %s36, 1
        %s310 = scalar_lea.sflag [#allocation4], %s309
        %s311 = sand.u32 %s36, 1
        %s312 = smul.addr %s311, 16
        %s313 = scalar_lea.vmem [#allocation3], %s312
        // Predicated region
        $region49: #{tpu_custom_call.1} parent=47 // pred_check
          %p314 = pneg %p49
        $region50: #{tpu_custom_call.1} parent=47 // pred_check_branch
          %316 = sbr.rel (%p314) target = $region52
        $region51: #{tpu_custom_call.1} parent=47 // pred_region
          %317 = dma.done %s310, 256
        $region52: #{tpu_custom_call.1} parent=47 // pred_fallthru
          _
        %s318 = sand.u32 %s28, 1
        %s319 = scalar_lea.sflag [#allocation7], %s318
        %s320 = sand.u32 %s62, 1
        %s321 = smul.addr %s320, 16
        %s322 = scalar_lea.vmem [#allocation6], %s321
        // Predicated region
        $region53: #{tpu_custom_call.1} parent=47 // pred_check
          %p323 = pneg %p75
        $region54: #{tpu_custom_call.1} parent=47 // pred_check_branch
          %325 = sbr.rel (%p323) target = $region56
        $region55: #{tpu_custom_call.1} parent=47 // pred_region
          %326 = dma.done %s319, 256
        $region56: #{tpu_custom_call.1} parent=47 // pred_fallthru
          _
        // Predicated region
        $region57: #{tpu_custom_call.1} parent=47 // pred_check
          %p327 = pneg %p96
        $region58: #{tpu_custom_call.1} parent=47 // pred_check_branch
          %329 = sbr.rel (%p327) target = $region60
        $region59: #{tpu_custom_call.1} parent=47 // pred_region
          %330 = dma.done [#allocation7], 3072
        $region60: #{tpu_custom_call.1} parent=47 // pred_fallthru
          _
        // Predicated region
        $region61: #{tpu_custom_call.1} parent=47 // pred_check
          %p331 = pneg %p138
        $region62: #{tpu_custom_call.1} parent=47 // pred_check_branch
          %333 = sbr.rel (%p331) target = $region64
        $region63: #{tpu_custom_call.1} parent=47 // pred_region
          %334 = dma.done [#allocation10], 3072
        $region64: #{tpu_custom_call.1} parent=47 // pred_fallthru
          _
        %s335 = sand.u32 %s36, 1
        %s336 = scalar_lea.sflag [#allocation4], %s335
        %s337 = sand.u32 %s36, 1
        %s338 = smul.addr %s337, 16
        %s339 = scalar_lea.vmem [#allocation3], %s338
        %p340 = pneg %p49
        %p341 = pneg %p46
        %s342 = sand.u32 %s28, 1
        %s343 = scalar_lea.sflag [#allocation7], %s342
        %s344 = sand.u32 %s62, 1
        %s345 = smul.addr %s344, 16
        %s346 = scalar_lea.vmem [#allocation6], %s345
        %p347 = pneg %p75
        %p348 = pneg %p72
        %p349 = pneg %p96
        %p350 = pneg %p93
        %p351 = pneg %p117
        %p352 = pneg %p114
        %p353 = pneg %p138
        %p354 = pneg %p135
        %p355 = pneg %p159
        %p356 = pneg %p156
        %p357 = pneg %p180
        %p358 = pneg %p177
        %p359 = pneg %p206
        %p360 = pneg %p203
        %s361 = sand.u32 %s193, 1
        %s362 = scalar_lea.sflag [#allocation5], %s361
        %s363 = sand.u32 %s193, 1
        %s364 = smul.addr %s363, 16
        %s365 = scalar_lea.vmem [#allocation11], %s364
        %vm367 = vcmask 1040384
        %vm368 = vsmask.f32 256
        %vm369 = vmand %vm367, %vm368
        %v370 = vld [vmem:[#allocation2] sm:$0x1]
        %v371 = vsel %vm369, 0, %v370
        %372 = vst [vmem:[#allocation2] sm:$0x1] %v371
        %vm373 = vsmask.f32 7938
        %vm374 = vmand %vm367, %vm373
        %v375 = vld [vmem:[#allocation2 + $0x8] sm:$0x1]
        %v376 = vsel %vm374, 0, %v375
        %377 = vst [vmem:[#allocation2 + $0x8] sm:$0x1] %v376
        %v378 = vld [vmem:[%s313] sm:$0xff]
        %v379 = vld [vmem:[%s313 + $0x8] sm:$0xff]
        %v380 = vld [vmem:[%s322] sm:$0xff]
        %v381 = vld [vmem:[%s322 + $0x8] sm:$0xff]
        %v382 = vmul.f32 %v378, %v380
        %v383 = vmul.f32 %v379, %v381
        %v384 = vpack.c.bf16 %v383, %v382
        %v386 = vunpack.c.l.b16 %v384
        %v387 = vunpack.c.h.b16 %v384
        %v388 = vpack.c.b16 %v386, %v386
        %v389 = vpack.c.b16 %v387, %v387
        %vm390 = vsmask.f32 4368
        %vm391 = vmor %vm368, %vm390
        %v393 = vshrl.u32 %v388, 16
        %v395 = vrot.slane %v393, 7
        %v396 = vshll.u32 %v388, 16
        %v398 = vor.u32 %v395, %v396
        %v399 = vrot.slane %v395, 4
        %v401 = vshrl.u32 %v389, 16
        %v403 = vrot.slane %v401, 7
        %v404 = vshll.u32 %v389, 16
        %v406 = vor.u32 %v403, %v404
        %v407 = vsel %vm391, %v399, %v406
        %v408 = vrot.slane %v403, 4
        %vm412 = vcmask 1043456
        %vm413 = vmand %vm412, %vm373
        %v414 = vld [vmem:[#allocation2] sm:$0xf]
        %v415 = vsel %vm413, %v398, %v414
        %416 = vst [vmem:[#allocation2] sm:$0xf] %v415
        %417 = vst [vmem:[#allocation2 + $0x4] sm:$0xf] %v407
        %v418 = vld [vmem:[#allocation2 + $0x8] sm:$0x1]
        %v419 = vsel %vm369, %v408, %v418
        %420 = vst [vmem:[#allocation2 + $0x8] sm:$0x1] %v419
        %v421 = vld [vmem:[%s3] sm:$0x1]
        %v423 = vlaneseq
        %v424 = vshrl.u32 %v423, 7
        %v425 = vsub.s32 0, %v424
        %v426 = vrot.slane %v421, %v425
        %v428 = vld [vmem:[#allocation2] sm:$0xf]
        %v429 = vld [vmem:[#allocation2 + $0x4] sm:$0xf]
        %v430 = vld [vmem:[#allocation2] sm:$0xf]
        %v431 = vld [vmem:[#allocation2 + $0x4] sm:$0xf]
        %v432 = vld [vmem:[#allocation2 + $0x8] sm:$0x1]
        %v433 = vld [vmem:[#allocation2] sm:$0xe]
        %v436 = vunpack.c.l.b16 %v428
        %v437 = vunpack.c.l.b16 %v429
        %v438 = vpack.c.b16 %v437, %v436
        %v443 = vunpack.c.l.b16 %v430
        %v444 = vunpack.c.l.b16 %v431
        %v445 = vunpack.c.l.b16 %v432
        %v446 = vpack.c.b16 %v444, %v443
        %v447 = vpack.c.b16 %v445, %v445
        %vm448 = vsmask.f32 7424
        %v450 = vshrl.u32 %v446, 16
        %v452 = vshll.u32 %v446, 16
        %v454 = vrot.slane %v452, 1
        %v455 = vor.u32 %v450, %v454
        %v457 = vshll.u32 %v447, 16
        %v459 = vrot.slane %v457, 1
        %v460 = vsel %vm448, %v455, %v459
        %v463 = vunpack.c.l.b16 %v433
        %v464 = vpack.c.b16 %v444, %v463
        %vm465 = vcmask 1046528
        %v466 = vrot.slane %v464, 1
        %v467 = vrot.slane %v447, 1
        %v468 = vsel %vm465, %v466, %v467
        %v470 = vld [vmem:[#allocation8] sm:$0xf]
        %v471 = vld [vmem:[#allocation8 + $0x4] sm:$0xf]
        %v472 = vld [vmem:[#allocation8 + $0x8] sm:$0xf]
        %v473 = vld [vmem:[#allocation8 + $0xc] sm:$0xf]
        %v474 = vld [vmem:[#allocation8 + $0x10] sm:$0xf]
        %v475 = vld [vmem:[#allocation8 + $0x14] sm:$0xf]
        %v476 = vld [vmem:[#allocation8 + $0x18] sm:$0xf]
        %v477 = vld [vmem:[#allocation8 + $0x1c] sm:$0xf]
        %v478 = vld [vmem:[#allocation8 + $0x20] sm:$0xf]
        %v479 = vld [vmem:[#allocation8 + $0x24] sm:$0xf]
        %v480 = vld [vmem:[#allocation8 + $0x28] sm:$0xf]
        %v481 = vld [vmem:[#allocation8 + $0x2c] sm:$0xf]
        %v482 = vld [vmem:[#allocation8 + $0x30] sm:$0xf]
        %v483 = vld [vmem:[#allocation8 + $0x34] sm:$0xf]
        %v484 = vld [vmem:[#allocation8 + $0x38] sm:$0xf]
        %v485 = vld [vmem:[#allocation8 + $0x3c] sm:$0xf]
        %v486 = vld [vmem:[#allocation8 + $0x40] sm:$0xf]
        %v487 = vld [vmem:[#allocation8 + $0x44] sm:$0xf]
        %v488 = vld [vmem:[#allocation8 + $0x48] sm:$0xf]
        %v489 = vld [vmem:[#allocation8 + $0x4c] sm:$0xf]
        %v490 = vld [vmem:[#allocation8 + $0x50] sm:$0xf]
        %v491 = vld [vmem:[#allocation8 + $0x54] sm:$0xf]
        %v492 = vld [vmem:[#allocation8 + $0x58] sm:$0xf]
        %v493 = vld [vmem:[#allocation8 + $0x5c] sm:$0xf]
        %v494 = vld [vmem:[#allocation8 + $0x60] sm:$0xf]
        %v495 = vld [vmem:[#allocation8 + $0x64] sm:$0xf]
        %v496 = vld [vmem:[#allocation8 + $0x68] sm:$0xf]
        %v497 = vld [vmem:[#allocation8 + $0x6c] sm:$0xf]
        %v498 = vld [vmem:[#allocation8 + $0x70] sm:$0xf]
        %v499 = vld [vmem:[#allocation8 + $0x74] sm:$0xf]
        %v500 = vld [vmem:[#allocation8 + $0x78] sm:$0xf]
        %v501 = vld [vmem:[#allocation8 + $0x7c] sm:$0xf]
        %v502 = vld [vmem:[#allocation8 + $0x80] sm:$0xf]
        %v503 = vld [vmem:[#allocation8 + $0x84] sm:$0xf]
        %v504 = vld [vmem:[#allocation8 + $0x88] sm:$0xf]
        %v505 = vld [vmem:[#allocation8 + $0x8c] sm:$0xf]
        %v506 = vld [vmem:[#allocation8 + $0x90] sm:$0xf]
        %v507 = vld [vmem:[#allocation8 + $0x94] sm:$0xf]
        %v508 = vld [vmem:[#allocation8 + $0x98] sm:$0xf]
        %v509 = vld [vmem:[#allocation8 + $0x9c] sm:$0xf]
        %v510 = vld [vmem:[#allocation8 + $0xa0] sm:$0xf]
        %v511 = vld [vmem:[#allocation8 + $0xa4] sm:$0xf]
        %v512 = vld [vmem:[#allocation8 + $0xa8] sm:$0xf]
        %v513 = vld [vmem:[#allocation8 + $0xac] sm:$0xf]
        %v514 = vld [vmem:[#allocation8 + $0xb0] sm:$0xf]
        %v515 = vld [vmem:[#allocation8 + $0xb4] sm:$0xf]
        %v516 = vld [vmem:[#allocation8 + $0xb8] sm:$0xf]
        %v517 = vld [vmem:[#allocation8 + $0xbc] sm:$0xf]
        %v566 = vunpack.c.l.b16 %v470
        %v567 = vunpack.c.l.b16 %v471
        %v568 = vunpack.c.l.b16 %v472
        %v569 = vunpack.c.l.b16 %v473
        %v570 = vunpack.c.l.b16 %v474
        %v571 = vunpack.c.l.b16 %v475
        %v572 = vunpack.c.l.b16 %v476
        %v573 = vunpack.c.l.b16 %v477
        %v574 = vunpack.c.l.b16 %v478
        %v575 = vunpack.c.l.b16 %v479
        %v576 = vunpack.c.l.b16 %v480
        %v577 = vunpack.c.l.b16 %v481
        %v578 = vunpack.c.l.b16 %v482
        %v579 = vunpack.c.l.b16 %v483
        %v580 = vunpack.c.l.b16 %v484
        %v581 = vunpack.c.l.b16 %v485
        %v582 = vunpack.c.l.b16 %v486
        %v583 = vunpack.c.l.b16 %v487
        %v584 = vunpack.c.l.b16 %v488
        %v585 = vunpack.c.l.b16 %v489
        %v586 = vunpack.c.l.b16 %v490
        %v587 = vunpack.c.l.b16 %v491
        %v588 = vunpack.c.l.b16 %v492
        %v589 = vunpack.c.l.b16 %v493
        %v590 = vunpack.c.l.b16 %v494
        %v591 = vunpack.c.l.b16 %v495
        %v592 = vunpack.c.l.b16 %v496
        %v593 = vunpack.c.l.b16 %v497
        %v594 = vunpack.c.l.b16 %v498
        %v595 = vunpack.c.l.b16 %v499
        %v596 = vunpack.c.l.b16 %v500
        %v597 = vunpack.c.l.b16 %v501
        %v598 = vunpack.c.l.b16 %v502
        %v599 = vunpack.c.l.b16 %v503
        %v600 = vunpack.c.l.b16 %v504
        %v601 = vunpack.c.l.b16 %v505
        %v602 = vunpack.c.l.b16 %v506
        %v603 = vunpack.c.l.b16 %v507
        %v604 = vunpack.c.l.b16 %v508
        %v605 = vunpack.c.l.b16 %v509
        %v606 = vunpack.c.l.b16 %v510
        %v607 = vunpack.c.l.b16 %v511
        %v608 = vunpack.c.l.b16 %v512
        %v609 = vunpack.c.l.b16 %v513
        %v610 = vunpack.c.l.b16 %v514
        %v611 = vunpack.c.l.b16 %v515
        %v612 = vunpack.c.l.b16 %v516
        %v613 = vunpack.c.l.b16 %v517
        %v614 = vpack.c.b16 %v567, %v566
        %v615 = vpack.c.b16 %v569, %v568
        %v616 = vpack.c.b16 %v571, %v570
        %v617 = vpack.c.b16 %v573, %v572
        %v618 = vpack.c.b16 %v575, %v574
        %v619 = vpack.c.b16 %v577, %v576
        %v620 = vpack.c.b16 %v579, %v578
        %v621 = vpack.c.b16 %v581, %v580
        %v622 = vpack.c.b16 %v583, %v582
        %v623 = vpack.c.b16 %v585, %v584
        %v624 = vpack.c.b16 %v587, %v586
        %v625 = vpack.c.b16 %v589, %v588
        %v626 = vpack.c.b16 %v591, %v590
        %v627 = vpack.c.b16 %v593, %v592
        %v628 = vpack.c.b16 %v595, %v594
        %v629 = vpack.c.b16 %v597, %v596
        %v630 = vpack.c.b16 %v599, %v598
        %v631 = vpack.c.b16 %v601, %v600
        %v632 = vpack.c.b16 %v603, %v602
        %v633 = vpack.c.b16 %v605, %v604
        %v634 = vpack.c.b16 %v607, %v606
        %v635 = vpack.c.b16 %v609, %v608
        %v636 = vpack.c.b16 %v611, %v610
        %v637 = vpack.c.b16 %v613, %v612
        %662 = vmatprep.subr.bf16.mxu0 0
        %663 = vmatpush1.bf16.msra.mxu0 %v621
        %664 = vmatprep.subr.bf16.mxu0 0
        %665 = vmatpush1.bf16.msra.mxu0 %v620
        %666 = vmatprep.subr.bf16.mxu0 0
        %667 = vmatpush1.bf16.msra.mxu0 %v619
        %668 = vmatprep.subr.bf16.mxu0 0
        %669 = vmatpush1.bf16.msra.mxu0 %v618
        %670 = vmatprep.subr.bf16.mxu0 0
        %671 = vmatpush1.bf16.msra.mxu0 %v617
        %672 = vmatprep.subr.bf16.mxu0 0
        %673 = vmatpush1.bf16.msra.mxu0 %v616
        %674 = vmatprep.subr.bf16.mxu0 0
        %675 = vmatpush1.bf16.msra.mxu0 %v615
        %676 = vmatprep.subr.bf16.mxu0 0
        %677 = vmatpush1.bf16.msra.mxu0 %v614
        %678 = vmatprep.subr.bf16.mxu0 0
        %679 = vmatpush2.bf16.msra.mxu0 %v629
        %680 = vmatprep.subr.bf16.mxu0 0
        %681 = vmatpush2.bf16.msra.mxu0 %v628
        %682 = vmatprep.subr.bf16.mxu0 0
        %683 = vmatpush2.bf16.msra.mxu0 %v627
        %684 = vmatprep.subr.bf16.mxu0 0
        %685 = vmatpush2.bf16.msra.mxu0 %v626
        %686 = vmatprep.subr.bf16.mxu0 0
        %687 = vmatpush2.bf16.msra.mxu0 %v625
        %688 = vmatprep.subr.bf16.mxu0 0
        %689 = vmatpush2.bf16.msra.mxu0 %v624
        %690 = vmatprep.subr.bf16.mxu0 0
        %691 = vmatpush2.bf16.msra.mxu0 %v623
        %692 = vmatprep.subr.bf16.mxu0 0
        %693 = vmatpush2.bf16.msra.mxu0 %v622
        %694 = vmatprep.mubr.bf16.mxu0 %v460
        %695 = vmatmul.mubr.bf16.gmra.mxu0 %v438
        %v696 = vpop.f32.mrf.mxu0
        %v697 = vadd.f32 0.0, %v696
        %v698 = vpop.f32.mrf.mxu0
        %v699 = vpop.f32.mrf.mxu0
        %v700 = vadd.f32 0.0, %v699
        %v701 = vpop.f32.mrf.mxu0
        %702 = vdwg.mxu0
        %703 = vmatprep.subr.bf16.mxu0 0
        %704 = vmatpush1.bf16.msra.mxu0 %v637
        %705 = vmatprep.subr.bf16.mxu0 0
        %706 = vmatpush1.bf16.msra.mxu0 %v636
        %707 = vmatprep.subr.bf16.mxu0 0
        %708 = vmatpush1.bf16.msra.mxu0 %v635
        %709 = vmatprep.subr.bf16.mxu0 0
        %710 = vmatpush1.bf16.msra.mxu0 %v634
        %711 = vmatprep.subr.bf16.mxu0 0
        %712 = vmatpush1.bf16.msra.mxu0 %v633
        %713 = vmatprep.subr.bf16.mxu0 0
        %714 = vmatpush1.bf16.msra.mxu0 %v632
        %715 = vmatprep.subr.bf16.mxu0 0
        %716 = vmatpush1.bf16.msra.mxu0 %v631
        %717 = vmatprep.subr.bf16.mxu0 0
        %718 = vmatpush1.bf16.msra.mxu0 %v630
        %719 = vmatprep.subr.bf16.mxu0 0
        %720 = vmatpush2.bf16.msra.mxu0 0
        %721 = vmatprep.subr.bf16.mxu0 0
        %722 = vmatpush2.bf16.msra.mxu0 0
        %723 = vmatprep.subr.bf16.mxu0 0
        %724 = vmatpush2.bf16.msra.mxu0 0
        %725 = vmatprep.subr.bf16.mxu0 0
        %726 = vmatpush2.bf16.msra.mxu0 0
        %727 = vmatprep.subr.bf16.mxu0 0
        %728 = vmatpush2.bf16.msra.mxu0 0
        %729 = vmatprep.subr.bf16.mxu0 0
        %730 = vmatpush2.bf16.msra.mxu0 0
        %731 = vmatprep.subr.bf16.mxu0 0
        %732 = vmatpush2.bf16.msra.mxu0 0
        %733 = vmatprep.subr.bf16.mxu0 0
        %734 = vmatpush2.bf16.msra.mxu0 0
        %735 = vmatprep.mubr.bf16.mxu0 0
        %736 = vmatmul.mubr.bf16.gmra.mxu0 %v468
        %v737 = vpop.f32.mrf.mxu0
        %v738 = vadd.f32 %v697, %v737
        %v739 = vpop.f32.mrf.mxu0
        %v740 = vpop.f32.mrf.mxu0
        %v741 = vadd.f32 %v700, %v740
        %v742 = vpop.f32.mrf.mxu0
        %743 = vdwg.mxu0
        %v744 = vadd.f32 %v426, %v738
        %v745 = vadd.f32 %v426, %v741
        %v746 = vmax.f32 %v744, 0.0
        %v747 = vmax.f32 %v745, 0.0
        %v748 = vld [vmem:[%s6] sm:$0x1]
        %v749 = vlaneseq
        %v750 = vshrl.u32 %v749, 7
        %v751 = vsub.s32 0, %v750
        %v752 = vrot.slane %v748, %v751
        %v753 = vmul.f32 %v752, %v378
        %v754 = vmul.f32 %v752, %v379
        %v755 = vld [vmem:[%s6 + $0x1] sm:$0x1]
        %v756 = vlaneseq
        %v757 = vshrl.u32 %v756, 7
        %v758 = vsub.s32 0, %v757
        %v759 = vrot.slane %v755, %v758
        %v760 = vmul.f32 %v759, %v380
        %v761 = vmul.f32 %v759, %v381
        %v762 = vadd.f32 %v753, %v760
        %v763 = vadd.f32 %v754, %v761
        %v764 = vadd.f32 %v746, %v762
        %v765 = vadd.f32 %v747, %v763
        %v766 = vpack.c.bf16 %v765, %v764
        %v768 = vunpack.c.l.b16 %v766
        %v769 = vunpack.c.h.b16 %v766
        %v770 = vpack.c.b16 %v768, %v768
        %v771 = vpack.c.b16 %v769, %v769
        %v773 = vshrl.u32 %v770, 16
        %v775 = vrot.slane %v773, 7
        %v776 = vshll.u32 %v770, 16
        %v778 = vor.u32 %v775, %v776
        %v779 = vrot.slane %v775, 4
        %v781 = vshrl.u32 %v771, 16
        %v783 = vrot.slane %v781, 7
        %v784 = vshll.u32 %v771, 16
        %v786 = vor.u32 %v783, %v784
        %v787 = vsel %vm391, %v779, %v786
        %v788 = vrot.slane %v783, 4
        %v792 = vsel %vm413, %v778, %v430
        %793 = vst [vmem:[#allocation2] sm:$0xf] %v792
        %794 = vst [vmem:[#allocation2 + $0x4] sm:$0xf] %v787
        %v795 = vld [vmem:[#allocation2 + $0x8] sm:$0x1]
        %v796 = vsel %vm369, %v788, %v795
        %797 = vst [vmem:[#allocation2 + $0x8] sm:$0x1] %v796
        %v798 = vld [vmem:[%s5] sm:$0x1]
        %v800 = vlaneseq
        %v801 = vshrl.u32 %v800, 7
        %v802 = vsub.s32 0, %v801
        %v803 = vrot.slane %v798, %v802
        %v805 = vld [vmem:[#allocation2] sm:$0xf]
        %v806 = vld [vmem:[#allocation2 + $0x4] sm:$0xf]
        %v807 = vld [vmem:[#allocation2] sm:$0xf]
        %v808 = vld [vmem:[#allocation2 + $0x4] sm:$0xf]
        %v809 = vld [vmem:[#allocation2 + $0x8] sm:$0x1]
        %v810 = vld [vmem:[#allocation2] sm:$0xe]
        %v813 = vunpack.c.l.b16 %v805
        %v814 = vunpack.c.l.b16 %v806
        %v815 = vpack.c.b16 %v814, %v813
        %v820 = vunpack.c.l.b16 %v807
        %v821 = vunpack.c.l.b16 %v808
        %v822 = vunpack.c.l.b16 %v809
        %v823 = vpack.c.b16 %v821, %v820
        %v824 = vpack.c.b16 %v822, %v822
        %v826 = vshrl.u32 %v823, 16
        %v828 = vshll.u32 %v823, 16
        %v830 = vrot.slane %v828, 1
        %v831 = vor.u32 %v826, %v830
        %v833 = vshll.u32 %v824, 16
        %v835 = vrot.slane %v833, 1
        %v836 = vsel %vm448, %v831, %v835
        %v839 = vunpack.c.l.b16 %v810
        %v840 = vpack.c.b16 %v821, %v839
        %v841 = vrot.slane %v840, 1
        %v842 = vrot.slane %v824, 1
        %v843 = vsel %vm465, %v841, %v842
        %v845 = vld [vmem:[#allocation9] sm:$0xf]
        %v846 = vld [vmem:[#allocation9 + $0x4] sm:$0xf]
        %v847 = vld [vmem:[#allocation9 + $0x8] sm:$0xf]
        %v848 = vld [vmem:[#allocation9 + $0xc] sm:$0xf]
        %v849 = vld [vmem:[#allocation9 + $0x10] sm:$0xf]
        %v850 = vld [vmem:[#allocation9 + $0x14] sm:$0xf]
        %v851 = vld [vmem:[#allocation9 + $0x18] sm:$0xf]
        %v852 = vld [vmem:[#allocation9 + $0x1c] sm:$0xf]
        %v853 = vld [vmem:[#allocation9 + $0x20] sm:$0xf]
        %v854 = vld [vmem:[#allocation9 + $0x24] sm:$0xf]
        %v855 = vld [vmem:[#allocation9 + $0x28] sm:$0xf]
        %v856 = vld [vmem:[#allocation9 + $0x2c] sm:$0xf]
        %v857 = vld [vmem:[#allocation9 + $0x30] sm:$0xf]
        %v858 = vld [vmem:[#allocation9 + $0x34] sm:$0xf]
        %v859 = vld [vmem:[#allocation9 + $0x38] sm:$0xf]
        %v860 = vld [vmem:[#allocation9 + $0x3c] sm:$0xf]
        %v861 = vld [vmem:[#allocation9 + $0x40] sm:$0xf]
        %v862 = vld [vmem:[#allocation9 + $0x44] sm:$0xf]
        %v863 = vld [vmem:[#allocation9 + $0x48] sm:$0xf]
        %v864 = vld [vmem:[#allocation9 + $0x4c] sm:$0xf]
        %v865 = vld [vmem:[#allocation9 + $0x50] sm:$0xf]
        %v866 = vld [vmem:[#allocation9 + $0x54] sm:$0xf]
        %v867 = vld [vmem:[#allocation9 + $0x58] sm:$0xf]
        %v868 = vld [vmem:[#allocation9 + $0x5c] sm:$0xf]
        %v869 = vld [vmem:[#allocation9 + $0x60] sm:$0xf]
        %v870 = vld [vmem:[#allocation9 + $0x64] sm:$0xf]
        %v871 = vld [vmem:[#allocation9 + $0x68] sm:$0xf]
        %v872 = vld [vmem:[#allocation9 + $0x6c] sm:$0xf]
        %v873 = vld [vmem:[#allocation9 + $0x70] sm:$0xf]
        %v874 = vld [vmem:[#allocation9 + $0x74] sm:$0xf]
        %v875 = vld [vmem:[#allocation9 + $0x78] sm:$0xf]
        %v876 = vld [vmem:[#allocation9 + $0x7c] sm:$0xf]
        %v877 = vld [vmem:[#allocation9 + $0x80] sm:$0xf]
        %v878 = vld [vmem:[#allocation9 + $0x84] sm:$0xf]
        %v879 = vld [vmem:[#allocation9 + $0x88] sm:$0xf]
        %v880 = vld [vmem:[#allocation9 + $0x8c] sm:$0xf]
        %v881 = vld [vmem:[#allocation9 + $0x90] sm:$0xf]
        %v882 = vld [vmem:[#allocation9 + $0x94] sm:$0xf]
        %v883 = vld [vmem:[#allocation9 + $0x98] sm:$0xf]
        %v884 = vld [vmem:[#allocation9 + $0x9c] sm:$0xf]
        %v885 = vld [vmem:[#allocation9 + $0xa0] sm:$0xf]
        %v886 = vld [vmem:[#allocation9 + $0xa4] sm:$0xf]
        %v887 = vld [vmem:[#allocation9 + $0xa8] sm:$0xf]
        %v888 = vld [vmem:[#allocation9 + $0xac] sm:$0xf]
        %v889 = vld [vmem:[#allocation9 + $0xb0] sm:$0xf]
        %v890 = vld [vmem:[#allocation9 + $0xb4] sm:$0xf]
        %v891 = vld [vmem:[#allocation9 + $0xb8] sm:$0xf]
        %v892 = vld [vmem:[#allocation9 + $0xbc] sm:$0xf]
        %v941 = vunpack.c.l.b16 %v845
        %v942 = vunpack.c.l.b16 %v846
        %v943 = vunpack.c.l.b16 %v847
        %v944 = vunpack.c.l.b16 %v848
        %v945 = vunpack.c.l.b16 %v849
        %v946 = vunpack.c.l.b16 %v850
        %v947 = vunpack.c.l.b16 %v851
        %v948 = vunpack.c.l.b16 %v852
        %v949 = vunpack.c.l.b16 %v853
        %v950 = vunpack.c.l.b16 %v854
        %v951 = vunpack.c.l.b16 %v855
        %v952 = vunpack.c.l.b16 %v856
        %v953 = vunpack.c.l.b16 %v857
        %v954 = vunpack.c.l.b16 %v858
        %v955 = vunpack.c.l.b16 %v859
        %v956 = vunpack.c.l.b16 %v860
        %v957 = vunpack.c.l.b16 %v861
        %v958 = vunpack.c.l.b16 %v862
        %v959 = vunpack.c.l.b16 %v863
        %v960 = vunpack.c.l.b16 %v864
        %v961 = vunpack.c.l.b16 %v865
        %v962 = vunpack.c.l.b16 %v866
        %v963 = vunpack.c.l.b16 %v867
        %v964 = vunpack.c.l.b16 %v868
        %v965 = vunpack.c.l.b16 %v869
        %v966 = vunpack.c.l.b16 %v870
        %v967 = vunpack.c.l.b16 %v871
        %v968 = vunpack.c.l.b16 %v872
        %v969 = vunpack.c.l.b16 %v873
        %v970 = vunpack.c.l.b16 %v874
        %v971 = vunpack.c.l.b16 %v875
        %v972 = vunpack.c.l.b16 %v876
        %v973 = vunpack.c.l.b16 %v877
        %v974 = vunpack.c.l.b16 %v878
        %v975 = vunpack.c.l.b16 %v879
        %v976 = vunpack.c.l.b16 %v880
        %v977 = vunpack.c.l.b16 %v881
        %v978 = vunpack.c.l.b16 %v882
        %v979 = vunpack.c.l.b16 %v883
        %v980 = vunpack.c.l.b16 %v884
        %v981 = vunpack.c.l.b16 %v885
        %v982 = vunpack.c.l.b16 %v886
        %v983 = vunpack.c.l.b16 %v887
        %v984 = vunpack.c.l.b16 %v888
        %v985 = vunpack.c.l.b16 %v889
        %v986 = vunpack.c.l.b16 %v890
        %v987 = vunpack.c.l.b16 %v891
        %v988 = vunpack.c.l.b16 %v892
        %v989 = vpack.c.b16 %v942, %v941
        %v990 = vpack.c.b16 %v944, %v943
        %v991 = vpack.c.b16 %v946, %v945
        %v992 = vpack.c.b16 %v948, %v947
        %v993 = vpack.c.b16 %v950, %v949
        %v994 = vpack.c.b16 %v952, %v951
        %v995 = vpack.c.b16 %v954, %v953
        %v996 = vpack.c.b16 %v956, %v955
        %v997 = vpack.c.b16 %v958, %v957
        %v998 = vpack.c.b16 %v960, %v959
        %v999 = vpack.c.b16 %v962, %v961
        %v1000 = vpack.c.b16 %v964, %v963
        %v1001 = vpack.c.b16 %v966, %v965
        %v1002 = vpack.c.b16 %v968, %v967
        %v1003 = vpack.c.b16 %v970, %v969
        %v1004 = vpack.c.b16 %v972, %v971
        %v1005 = vpack.c.b16 %v974, %v973
        %v1006 = vpack.c.b16 %v976, %v975
        %v1007 = vpack.c.b16 %v978, %v977
        %v1008 = vpack.c.b16 %v980, %v979
        %v1009 = vpack.c.b16 %v982, %v981
        %v1010 = vpack.c.b16 %v984, %v983
        %v1011 = vpack.c.b16 %v986, %v985
        %v1012 = vpack.c.b16 %v988, %v987
        %1037 = vmatprep.subr.bf16.mxu0 0
        %1038 = vmatpush1.bf16.msra.mxu0 %v996
        %1039 = vmatprep.subr.bf16.mxu0 0
        %1040 = vmatpush1.bf16.msra.mxu0 %v995
        %1041 = vmatprep.subr.bf16.mxu0 0
        %1042 = vmatpush1.bf16.msra.mxu0 %v994
        %1043 = vmatprep.subr.bf16.mxu0 0
        %1044 = vmatpush1.bf16.msra.mxu0 %v993
        %1045 = vmatprep.subr.bf16.mxu0 0
        %1046 = vmatpush1.bf16.msra.mxu0 %v992
        %1047 = vmatprep.subr.bf16.mxu0 0
        %1048 = vmatpush1.bf16.msra.mxu0 %v991
        %1049 = vmatprep.subr.bf16.mxu0 0
        %1050 = vmatpush1.bf16.msra.mxu0 %v990
        %1051 = vmatprep.subr.bf16.mxu0 0
        %1052 = vmatpush1.bf16.msra.mxu0 %v989
        %1053 = vmatprep.subr.bf16.mxu0 0
        %1054 = vmatpush2.bf16.msra.mxu0 %v1004
        %1055 = vmatprep.subr.bf16.mxu0 0
        %1056 = vmatpush2.bf16.msra.mxu0 %v1003
        %1057 = vmatprep.subr.bf16.mxu0 0
        %1058 = vmatpush2.bf16.msra.mxu0 %v1002
        %1059 = vmatprep.subr.bf16.mxu0 0
        %1060 = vmatpush2.bf16.msra.mxu0 %v1001
        %1061 = vmatprep.subr.bf16.mxu0 0
        %1062 = vmatpush2.bf16.msra.mxu0 %v1000
        %1063 = vmatprep.subr.bf16.mxu0 0
        %1064 = vmatpush2.bf16.msra.mxu0 %v999
        %1065 = vmatprep.subr.bf16.mxu0 0
        %1066 = vmatpush2.bf16.msra.mxu0 %v998
        %1067 = vmatprep.subr.bf16.mxu0 0
        %1068 = vmatpush2.bf16.msra.mxu0 %v997
        %1069 = vmatprep.mubr.bf16.mxu0 %v836
        %1070 = vmatmul.mubr.bf16.gmra.mxu0 %v815
        %v1071 = vpop.f32.mrf.mxu0
        %v1072 = vadd.f32 0.0, %v1071
        %v1073 = vpop.f32.mrf.mxu0
        %v1074 = vpop.f32.mrf.mxu0
        %v1075 = vadd.f32 0.0, %v1074
        %v1076 = vpop.f32.mrf.mxu0
        %1077 = vdwg.mxu0
        %1078 = vmatprep.subr.bf16.mxu0 0
        %1079 = vmatpush1.bf16.msra.mxu0 %v1012
        %1080 = vmatprep.subr.bf16.mxu0 0
        %1081 = vmatpush1.bf16.msra.mxu0 %v1011
        %1082 = vmatprep.subr.bf16.mxu0 0
        %1083 = vmatpush1.bf16.msra.mxu0 %v1010
        %1084 = vmatprep.subr.bf16.mxu0 0
        %1085 = vmatpush1.bf16.msra.mxu0 %v1009
        %1086 = vmatprep.subr.bf16.mxu0 0
        %1087 = vmatpush1.bf16.msra.mxu0 %v1008
        %1088 = vmatprep.subr.bf16.mxu0 0
        %1089 = vmatpush1.bf16.msra.mxu0 %v1007
        %1090 = vmatprep.subr.bf16.mxu0 0
        %1091 = vmatpush1.bf16.msra.mxu0 %v1006
        %1092 = vmatprep.subr.bf16.mxu0 0
        %1093 = vmatpush1.bf16.msra.mxu0 %v1005
        %1094 = vmatprep.subr.bf16.mxu0 0
        %1095 = vmatpush2.bf16.msra.mxu0 0
        %1096 = vmatprep.subr.bf16.mxu0 0
        %1097 = vmatpush2.bf16.msra.mxu0 0
        %1098 = vmatprep.subr.bf16.mxu0 0
        %1099 = vmatpush2.bf16.msra.mxu0 0
        %1100 = vmatprep.subr.bf16.mxu0 0
        %1101 = vmatpush2.bf16.msra.mxu0 0
        %1102 = vmatprep.subr.bf16.mxu0 0
        %1103 = vmatpush2.bf16.msra.mxu0 0
        %1104 = vmatprep.subr.bf16.mxu0 0
        %1105 = vmatpush2.bf16.msra.mxu0 0
        %1106 = vmatprep.subr.bf16.mxu0 0
        %1107 = vmatpush2.bf16.msra.mxu0 0
        %1108 = vmatprep.subr.bf16.mxu0 0
        %1109 = vmatpush2.bf16.msra.mxu0 0
        %1110 = vmatprep.mubr.bf16.mxu0 0
        %1111 = vmatmul.mubr.bf16.gmra.mxu0 %v843
        %v1112 = vpop.f32.mrf.mxu0
        %v1113 = vadd.f32 %v1072, %v1112
        %v1114 = vpop.f32.mrf.mxu0
        %v1115 = vpop.f32.mrf.mxu0
        %v1116 = vadd.f32 %v1075, %v1115
        %v1117 = vpop.f32.mrf.mxu0
        %1118 = vdwg.mxu0
        %v1119 = vadd.f32 %v803, %v1113
        %v1120 = vadd.f32 %v803, %v1116
        %1121 = vst [vmem:[%s365] sm:$0xff] %v1119
        %1122 = vst [vmem:[%s365 + $0x8] sm:$0xff] %v1120
        %s1123 = sand.u32 %s193, 1
        %s1124 = scalar_lea.sflag [#allocation5], %s1123
        %s1125 = sand.u32 %s193, 1
        %s1126 = smul.addr %s1125, 16
        %s1127 = scalar_lea.vmem [#allocation11], %s1126
        // Predicated region
        $region65: #{tpu_custom_call.1} parent=47 // pred_check
          %p1128 = pneg %p203
        $region66: #{tpu_custom_call.1} parent=47 // pred_check_branch
          %1130 = sbr.rel (%p1128) target = $region68
        $region67: #{tpu_custom_call.1} parent=47 // pred_region
          %s1132 = ssub.s32 256, 256
          %1133 = vsyncadd %s1124, %s1132
          %s1134 = smul.addr %s28, 2
          %s1135 = smul.addr %s1134, 128
          %s1136 = scalar_lea.hbm %s7, %s1135
          %s1137 = sshll.u32 %s1127, 4
          %s1138 = int_to_ptr.vmem [resolvable:$true] %s1137
          %1143 = dma.vmem_to_hbm [thread:$0]  %s1138, 256, %s1136, %s1124, 128, 128, 8
        $region68: #{tpu_custom_call.1} parent=47 // pred_fallthru
          _
      $region48: #{tpu_custom_call.1} parent=5 // pred_fallthru
        _
      %p1144 = scmp.le.s32.totalorder 2, %s23
      // Predicated region
      $region69: #{tpu_custom_call.1} parent=5 // pred_check
        %p1145 = pneg %p1144
      $region70: #{tpu_custom_call.1} parent=5 // pred_check_branch
        %1147 = sbr.rel (%p1145) target = $region72
      $region71: #{tpu_custom_call.1} parent=5 // pred_region
        %s1148 = ssub.s32 %s23, 2
        // Predicated region
        $region73: #{tpu_custom_call.1} parent=71 // pred_check
          %p1149 = pneg %p209
        $region74: #{tpu_custom_call.1} parent=71 // pred_check_branch
          %1151 = sbr.rel (%p1149) target = $region76
        $region75: #{tpu_custom_call.1} parent=71 // pred_region
          %s1152 = sand.u32 %s194, 1
          %s1153 = scalar_lea.sflag [#allocation5], %s1152
          %s1154 = sand.u32 %s194, 1
          %s1155 = smul.addr %s1154, 16
          %s1156 = scalar_lea.vmem [#allocation11], %s1155
          %1157 = dma.done %s1153, 256
        $region76: #{tpu_custom_call.1} parent=71 // pred_fallthru
          _
      $region72: #{tpu_custom_call.1} parent=5 // pred_fallthru
        _
    $region6: #{tpu_custom_call.1} parent=1 // loop_footer
      %s27 = sadd.s32 1, %s23
    $region7: #{tpu_custom_call.1} parent=1 // loop_footer_branch
      %22 = sbr.rel target = $region3
    $region8: #{tpu_custom_call.1} parent=1 // loop_exit
      _
    %1158 = vsyncpa [#allocation4], 1
    %s1159 = scalar_lea.sflag [#allocation4], 1
    %1160 = vsyncpa %s1159, 1
    %1161 = vsyncpa [#allocation7], 1
    %s1162 = scalar_lea.sflag [#allocation7], 1
    %1163 = vsyncpa %s1162, 1
    %1164 = vsyncpa [#allocation10], 1
    %1165 = vsyncpa [#allocation5], 1
    %s1166 = scalar_lea.sflag [#allocation5], 1
    %1167 = vsyncpa %s1166, 1

</llo_original>
